<compile_context>
chip_gen: v7x
topology: tpu7x:2x2x1
jax: 0.10.0
libtpu: 0.0.40
codegen_flags: <defaults>
</compile_context>

<pallas_src>
import functools

import jax
import jax.numpy as jnp
from jax.experimental import pallas as pl
from jax.experimental.pallas import tpu as pltpu

EPS = 1e-5
VMEM_LIMIT = 32 * 1024 * 1024  # safe on v5e/v6e/v7x; tiles below stay ~1-3 MiB


def _round_up(x, m):
    return (x + m - 1) // m * m


def _pick_tile(dim, candidates=(256, 128, 64, 32, 16, 8)):
    for c in candidates:
        if dim % c == 0:
            return c
    return dim


def _pick_tk(k):
    # K tile must be a multiple of 128 (lane dim of the A block) and divide K;
    # otherwise fall back to the full K (block == full dim is always legal).
    for c in (512, 384, 256):
        if k > c and k % c == 0:
            return c
    return k


# ----------------------------------------------------------------------------
# Fused conv matmul (bf16 MXU, f32 accum) + BN partial statistics epilogue
# ----------------------------------------------------------------------------
def _matmul_stats_kernel(a_ref, b_ref, o_ref, psum_ref, psq_ref, acc_ref):
    k = pl.program_id(2)

    @pl.when(k == 0)
    def _():
        acc_ref[...] = jnp.zeros_like(acc_ref)

    acc_ref[...] += jnp.dot(a_ref[...], b_ref[...],
                            preferred_element_type=jnp.float32)

    @pl.when(k == pl.num_programs(2) - 1)
    def _():
        out = acc_ref[...]
        o_ref[...] = out
        # Per-(M tile, N tile) partial BN statistics, computed while the tile is
        # still resident in VMEM (free VPU work under the MXU).
        s = jnp.sum(out, axis=0, keepdims=True)
        sq = jnp.sum(out * out, axis=0, keepdims=True)
        psum_ref[...] = s.reshape(psum_ref.shape)
        psq_ref[...] = sq.reshape(psq_ref.shape)


def conv_matmul_stats(a, b):
    """a: [Mp, K] bf16, b: [K, C] bf16 -> (conv [Mp, C] f32, psum [ni,1,C], psq [ni,1,C])."""
    Mp, K = a.shape
    K2, C = b.shape
    assert K == K2
    tm = _pick_tile(Mp)
    tn = 128 if C % 128 == 0 else C
    tk = _pick_tk(K)
    ni, nj, nk = Mp // tm, C // tn, K // tk
    return pl.pallas_call(
        _matmul_stats_kernel,
        out_shape=(
            jax.ShapeDtypeStruct((Mp, C), jnp.float32),
            jax.ShapeDtypeStruct((ni, 1, C), jnp.float32),
            jax.ShapeDtypeStruct((ni, 1, C), jnp.float32),
        ),
        grid_spec=pltpu.PrefetchScalarGridSpec(
            num_scalar_prefetch=0,
            grid=(ni, nj, nk),
            in_specs=[
                pl.BlockSpec((tm, tk), lambda i, j, k: (i, k)),
                pl.BlockSpec((tk, tn), lambda i, j, k: (k, j)),
            ],
            out_specs=(
                pl.BlockSpec((tm, tn), lambda i, j, k: (i, j)),
                pl.BlockSpec((1, 1, tn), lambda i, j, k: (i, 0, j)),
                pl.BlockSpec((1, 1, tn), lambda i, j, k: (i, 0, j)),
            ),
            scratch_shapes=[pltpu.VMEM((tm, tn), jnp.float32)],
        ),
        compiler_params=pltpu.CompilerParams(
            dimension_semantics=("parallel", "parallel", "arbitrary"),
            vmem_limit_bytes=VMEM_LIMIT,
        ),
    )(a, b)


# ----------------------------------------------------------------------------
# Fused folded-BN affine [+ residual] [+ ReLU]
# ----------------------------------------------------------------------------
def _bn_act_kernel(x_ref, s_ref, b_ref, o_ref, *, relu):
    y = x_ref[...] * s_ref[...] + b_ref[...]
    if relu:
        y = jnp.maximum(y, 0.0)
    o_ref[...] = y


def _bn_act_res_kernel(x_ref, s_ref, b_ref, r_ref, o_ref, *, relu):
    y = x_ref[...] * s_ref[...] + b_ref[...] + r_ref[...]
    if relu:
        y = jnp.maximum(y, 0.0)
    o_ref[...] = y


def pallas_bn_act(x, scale, bias, residual=None, relu=True):
    """y = x * scale + bias [+ residual] [-> relu];  x: [Mp, C], scale/bias: [1, C]."""
    Mp, C = x.shape
    tm = _pick_tile(Mp)
    row_spec = pl.BlockSpec((tm, C), lambda i: (i, 0))
    vec_spec = pl.BlockSpec((1, C), lambda i: (0, 0))
    if residual is None:
        kernel = functools.partial(_bn_act_kernel, relu=relu)
        args = (x, scale, bias)
        in_specs = [row_spec, vec_spec, vec_spec]
    else:
        kernel = functools.partial(_bn_act_res_kernel, relu=relu)
        args = (x, scale, bias, residual)
        in_specs = [row_spec, vec_spec, vec_spec, row_spec]
    return pl.pallas_call(
        kernel,
        out_shape=jax.ShapeDtypeStruct((Mp, C), jnp.float32),
        grid_spec=pltpu.PrefetchScalarGridSpec(
            num_scalar_prefetch=0,
            grid=(Mp // tm,),
            in_specs=in_specs,
            out_specs=row_spec,
        ),
        compiler_params=pltpu.CompilerParams(
            dimension_semantics=("parallel",),
            vmem_limit_bytes=VMEM_LIMIT,
        ),
    )(*args)


# ----------------------------------------------------------------------------
# Glue: im2col (XLA slicing only), conv+BN+act composite, maxpool, ResNet forward
# ----------------------------------------------------------------------------
def _im2col(x, kh, kw, stride, pad):
    """x: [N,H,W,C] -> patches [N*Ho*Wo, kh*kw*C]  (window index slowest, channel fastest)."""
    N, H, W, C = x.shape
    Ho = (H + 2 * pad - kh) // stride + 1
    Wo = (W + 2 * pad - kw) // stride + 1
    if pad:
        x = jnp.pad(x, ((0, 0), (pad, pad), (pad, pad), (0, 0)))
    cols = []
    for di in range(kh):
        for dj in range(kw):
            cols.append(jax.lax.slice(
                x, (0, di, dj, 0),
                (N, di + (Ho - 1) * stride + 1, dj + (Wo - 1) * stride + 1, C),
                (1, stride, stride, 1)))
    patches = jnp.stack(cols, axis=3).reshape(N * Ho * Wo, kh * kw * C)
    return patches, (N, Ho, Wo)


def conv_bn(x, w, gamma, beta, stride, pad, relu=True, residual=None):
    """conv (no bias) + BatchNorm (training-mode batch stats) [+ residual] [+ relu].

    x: [N,H,W,Cin] f32; w: PyTorch-layout [Cout,Cin,kh,kw]; returns [N,Ho,Wo,Cout] f32.
    """
    # TODO(synk): im2col still materializes the patch matrix in HBM (in bf16 to halve the
    # bytes); a tap-gridded Pallas conv that indexes the padded NHWC activation directly
    # would remove it entirely.
    Cout, Cin, kh, kw = w.shape
    patches, (N, Ho, Wo) = _im2col(x.astype(jnp.bfloat16), kh, kw, stride, pad)
    M = N * Ho * Wo
    Mp = _round_up(M, 8)
    if Mp != M:
        patches = jnp.pad(patches, ((0, Mp - M), (0, 0)))
    wmat = jnp.transpose(w, (2, 3, 1, 0)).reshape(kh * kw * Cin, Cout)

    conv, psum, psq = conv_matmul_stats(patches, wmat.astype(jnp.bfloat16))

    # Training-mode BN batch statistics (biased variance, like PyTorch).  Padded rows are
    # all-zero patches -> zero conv rows -> zero contribution; divide by the true M.
    mean = jnp.sum(psum, axis=(0, 1)) / M
    var = jnp.maximum(jnp.sum(psq, axis=(0, 1)) / M - mean * mean, 0.0)
    scale = gamma * jax.lax.rsqrt(var + EPS)
    bias = beta - mean * scale

    res = None
    if residual is not None:
        res = residual.reshape(M, Cout)
        if Mp != M:
            res = jnp.pad(res, ((0, Mp - M), (0, 0)))

    out = pallas_bn_act(conv, scale.reshape(1, Cout), bias.reshape(1, Cout),
                        residual=res, relu=relu)
    return out[:M].reshape(N, Ho, Wo, Cout)


def maxpool_3x3_s2_p1(x):
    """3x3 / stride 2 / pad 1 max pool on NHWC input."""
    # TODO(synk): implemented as an XLA-fused max-tree over the 9 strided views (per the perf
    # review, avoids writing a 9x patch tensor to HBM); a Pallas window kernel would need
    # strided sublane loads.
    N, H, W, C = x.shape
    Ho = (H + 2 - 3) // 2 + 1
    Wo = (W + 2 - 3) // 2 + 1
    xp = jnp.pad(x, ((0, 0), (1, 1), (1, 1), (0, 0)), constant_values=-jnp.inf)
    out = None
    for di in range(3):
        for dj in range(3):
            v = jax.lax.slice(xp, (0, di, dj, 0),
                              (N, di + 2 * (Ho - 1) + 1, dj + 2 * (Wo - 1) + 1, C),
                              (1, 2, 2, 1))
            out = v if out is None else jnp.maximum(out, v)
    return out


def basic_block(x, p, stride):
    identity = x
    out = conv_bn(x, p['conv1_w'], p['bn1_g'], p['bn1_b'], stride, 1, relu=True)
    if 'down_w' in p:
        identity = conv_bn(x, p['down_w'], p['down_g'], p['down_b'],
                           stride, 0, relu=False)
    out = conv_bn(out, p['conv2_w'], p['bn2_g'], p['bn2_b'], 1, 1,
                  relu=True, residual=identity)
    return out


# TODO(synk): Bottleneck blocks (ResNet-50+) would reuse conv_bn identically; only the
# BasicBlock/ResNet-18 configuration is instantiated here.
LAYER_CFG = [('layer1', 64, 2, 1),
             ('layer2', 128, 2, 2),
             ('layer3', 256, 2, 2),
             ('layer4', 512, 2, 2)]


def resnet18_forward(x_nchw, params):
    """Input NCHW [N,3,H,W] -> output NCHW [N,512,H/32,W/32] (C_5)."""
    x = jnp.transpose(x_nchw, (0, 2, 3, 1)).astype(jnp.float32)   # -> NHWC
    x = conv_bn(x, params['conv1_w'], params['bn1_g'], params['bn1_b'],
                stride=2, pad=3, relu=True)
    x = maxpool_3x3_s2_p1(x)
    for name, _, _, stride in LAYER_CFG:
        blocks = params[name]
        x = basic_block(x, blocks[0], stride)
        for bp in blocks[1:]:
            x = basic_block(x, bp, 1)
    return jnp.transpose(x, (0, 3, 1, 2))                          # -> NCHW


# ----------------------------------------------------------------------------
# Deterministic parameter init (kaiming_normal fan_out / relu, BN gamma=1 beta=0)
# ----------------------------------------------------------------------------
def _kaiming(key, shape):
    cout, _, kh, kw = shape
    fan_out = cout * kh * kw
    std = (2.0 / fan_out) ** 0.5
    return std * jax.random.normal(key, shape, dtype=jnp.float32)


def init_resnet18_params(key):
    params = {}
    key, k = jax.random.split(key)
    params['conv1_w'] = _kaiming(k, (64, 3, 7, 7))
    params['bn1_g'] = jnp.ones((64,), jnp.float32)
    params['bn1_b'] = jnp.zeros((64,), jnp.float32)
    inplanes = 64
    for name, planes, nblocks, stride in LAYER_CFG:
        blocks = []
        for b in range(nblocks):
            s = stride if b == 0 else 1
            key, k1, k2, k3 = jax.random.split(key, 4)
            bp = {
                'conv1_w': _kaiming(k1, (planes, inplanes, 3, 3)),
                'bn1_g': jnp.ones((planes,), jnp.float32),
                'bn1_b': jnp.zeros((planes,), jnp.float32),
                'conv2_w': _kaiming(k2, (planes, planes, 3, 3)),
                'bn2_g': jnp.ones((planes,), jnp.float32),
                'bn2_b': jnp.zeros((planes,), jnp.float32),
            }
            if b == 0 and (s != 1 or inplanes != planes):
                bp['down_w'] = _kaiming(k3, (planes, inplanes, 1, 1))
                bp['down_g'] = jnp.ones((planes,), jnp.float32)
                bp['down_b'] = jnp.zeros((planes,), jnp.float32)
            blocks.append(bp)
            inplanes = planes
        params[name] = blocks
    return params


if __name__ == "__main__":
    key = jax.random.PRNGKey(0)
    kx, kp = jax.random.split(key)
    # NCHW input, small spatial size consistent with ResNet's /32 downsampling.
    x = jax.random.normal(kx, (2, 3, 64, 64), dtype=jnp.float32)
    params = init_resnet18_params(kp)

    c5 = resnet18_forward(x, params)
    c5 = jax.block_until_ready(c5)

    assert c5.shape == (2, 512, 2, 2), c5.shape
    assert bool(jnp.all(jnp.isfinite(c5)))
    assert bool(jnp.all(c5 >= 0.0))  # final ReLU
    print("KERNEL_OK")
</pallas_src>

<mosaic_0001>
module attributes {stable_mosaic.version = 11 : i64} {
  func.func @_matmul_stats_kernel(%arg0: i32, %arg1: i32, %arg2: i32, %arg3: memref<256x147xbf16, #tpu.memory_space<vmem>>, %arg4: memref<147x64xbf16, #tpu.memory_space<vmem>>, %arg5: memref<256x64xf32, #tpu.memory_space<vmem>>, %arg6: memref<1x1x64xf32, #tpu.memory_space<vmem>>, %arg7: memref<1x1x64xf32, #tpu.memory_space<vmem>>, %arg8: memref<256x64xf32, #tpu.memory_space<vmem>>) attributes {dimension_semantics = [#tpu.dimension_semantics<parallel>, #tpu.dimension_semantics<parallel>, #tpu.dimension_semantics<arbitrary>], iteration_bounds = array<i64: 8, 1, 1>, scalar_prefetch = 0 : i64, scratch_operands = 1 : i64, tpu.core_type = #tpu.core_type<tc>, window_params = [{transform_indices = @transform_0, window_bounds = array<i64: 256, 147>}, {transform_indices = @transform_1, window_bounds = array<i64: 147, 64>}, {transform_indices = @transform_2, window_bounds = array<i64: 256, 64>}, {transform_indices = @transform_3, window_bounds = array<i64: 1, 1, 64>}, {transform_indices = @transform_4, window_bounds = array<i64: 1, 1, 64>}]} {
    %c0_i32 = arith.constant 0 : i32
    %0 = arith.cmpi eq, %arg2, %c0_i32 : i32
    %1 = arith.extui %0 : i1 to i32
    %c0_i32_0 = arith.constant 0 : i32
    %2 = arith.cmpi ne, %1, %c0_i32_0 : i32
    scf.if %2 {
      %cst_10 = arith.constant 0.000000e+00 : f32
      %12 = vector.broadcast %cst_10 : f32 to vector<256x64xf32>
      %c0_11 = arith.constant 0 : index
      %c0_12 = arith.constant 0 : index
      %13 = vector.load %arg8[%c0_11, %c0_12] : memref<256x64xf32, #tpu.memory_space<vmem>>, vector<256x64xf32>
      tpu.vector_store %arg8[%c0_11, %c0_12], %12 {strides = array<i32>} : memref<256x64xf32, #tpu.memory_space<vmem>>, vector<256x64xf32>,
    } else {
    }
    %c0 = arith.constant 0 : index
    %c0_1 = arith.constant 0 : index
    %3 = vector.load %arg8[%c0, %c0_1] : memref<256x64xf32, #tpu.memory_space<vmem>>, vector<256x64xf32>
    %c0_2 = arith.constant 0 : index
    %c0_3 = arith.constant 0 : index
    %4 = vector.load %arg3[%c0_2, %c0_3] : memref<256x147xbf16, #tpu.memory_space<vmem>>, vector<256x147xbf16>
    %c0_4 = arith.constant 0 : index
    %c0_5 = arith.constant 0 : index
    %5 = vector.load %arg4[%c0_4, %c0_5] : memref<147x64xbf16, #tpu.memory_space<vmem>>, vector<147x64xbf16>
    %cst = arith.constant dense<0.000000e+00> : vector<256x64xf32>
    %6 = tpu.matmul %4, %5, %cst {dimension_numbers = #tpu.dot_dimension_numbers<[1], [0], [0], [1], [0, 0, 1, 1], [], []>} : vector<256x147xbf16>, vector<147x64xbf16>, vector<256x64xf32> -> vector<256x64xf32>
    %7 = arith.addf %3, %6 : vector<256x64xf32>
    %c0_6 = arith.constant 0 : index
    %c0_7 = arith.constant 0 : index
    %8 = vector.load %arg8[%c0_6, %c0_7] : memref<256x64xf32, #tpu.memory_space<vmem>>, vector<256x64xf32>
    tpu.vector_store %arg8[%c0_6, %c0_7], %7 {strides = array<i32>} : memref<256x64xf32, #tpu.memory_space<vmem>>, vector<256x64xf32>,
    %c0_i32_8 = arith.constant 0 : i32
    %9 = arith.cmpi eq, %arg2, %c0_i32_8 : i32
    %10 = arith.extui %9 : i1 to i32
    %c0_i32_9 = arith.constant 0 : i32
    %11 = arith.cmpi ne, %10, %c0_i32_9 : i32
    scf.if %11 {
      %c0_10 = arith.constant 0 : index
      %c0_11 = arith.constant 0 : index
      %12 = vector.load %arg8[%c0_10, %c0_11] : memref<256x64xf32, #tpu.memory_space<vmem>>, vector<256x64xf32>
      %c0_12 = arith.constant 0 : index
      %c0_13 = arith.constant 0 : index
      %13 = vector.load %arg5[%c0_12, %c0_13] : memref<256x64xf32, #tpu.memory_space<vmem>>, vector<256x64xf32>
      tpu.vector_store %arg5[%c0_12, %c0_13], %12 {strides = array<i32>} : memref<256x64xf32, #tpu.memory_space<vmem>>, vector<256x64xf32>,
      %cst_14 = arith.constant dense<0.000000e+00> : vector<64xf32>
      %14 = vector.multi_reduction <add>, %12, %cst_14 [0] : vector<256x64xf32> to vector<64xf32>
      %15 = vector.shape_cast %14 : vector<64xf32> to vector<1x64xf32>
      %16 = arith.mulf %12, %12 : vector<256x64xf32>
      %cst_15 = arith.constant dense<0.000000e+00> : vector<64xf32>
      %17 = vector.multi_reduction <add>, %16, %cst_15 [0] : vector<256x64xf32> to vector<64xf32>
      %18 = vector.shape_cast %17 : vector<64xf32> to vector<1x64xf32>
      %19 = vector.shape_cast %15 : vector<1x64xf32> to vector<1x1x64xf32>
      %c0_16 = arith.constant 0 : index
      %c0_17 = arith.constant 0 : index
      %c0_18 = arith.constant 0 : index
      %20 = vector.load %arg6[%c0_16, %c0_17, %c0_18] : memref<1x1x64xf32, #tpu.memory_space<vmem>>, vector<1x1x64xf32>
      tpu.vector_store %arg6[%c0_16, %c0_17, %c0_18], %19 {strides = array<i32>} : memref<1x1x64xf32, #tpu.memory_space<vmem>>, vector<1x1x64xf32>,
      %21 = vector.shape_cast %18 : vector<1x64xf32> to vector<1x1x64xf32>
      %c0_19 = arith.constant 0 : index
      %c0_20 = arith.constant 0 : index
      %c0_21 = arith.constant 0 : index
      %22 = vector.load %arg7[%c0_19, %c0_20, %c0_21] : memref<1x1x64xf32, #tpu.memory_space<vmem>>, vector<1x1x64xf32>
      tpu.vector_store %arg7[%c0_19, %c0_20, %c0_21], %21 {strides = array<i32>} : memref<1x1x64xf32, #tpu.memory_space<vmem>>, vector<1x1x64xf32>,
    } else {
    }
    return
  }
  func.func @transform_0(%arg0: i32, %arg1: i32, %arg2: i32) -> (i32, i32) {
    %c0_i32 = arith.constant 0 : i32
    return %arg0, %arg2 : i32, i32
  }
  func.func @transform_1(%arg0: i32, %arg1: i32, %arg2: i32) -> (i32, i32) {
    %c0_i32 = arith.constant 0 : i32
    return %arg2, %arg1 : i32, i32
  }
  func.func @transform_2(%arg0: i32, %arg1: i32, %arg2: i32) -> (i32, i32) {
    %c0_i32 = arith.constant 0 : i32
    return %arg0, %arg1 : i32, i32
  }
  func.func @transform_3(%arg0: i32, %arg1: i32, %arg2: i32) -> (i32, i32, i32) {
    %c0_i32 = arith.constant 0 : i32
    %c0_i32_0 = arith.constant 0 : i32
    return %arg0, %c0_i32, %arg1 : i32, i32, i32
  }
  func.func @transform_4(%arg0: i32, %arg1: i32, %arg2: i32) -> (i32, i32, i32) {
    %c0_i32 = arith.constant 0 : i32
    %c0_i32_0 = arith.constant 0 : i32
    return %arg0, %c0_i32, %arg1 : i32, i32, i32
  }
}

</mosaic_0001>

<llo_original>
// kernel: tpu_custom_call.1
$region0: #{tpu_custom_call.1}
  #allocation0 [shape = 'u32[]', space=smem, size = 0x4, offset = 0x4, fixed_abs, tag = 'smem constant byte address 0x4 - core index']
  #allocation1 [shape = 'u32[144,128]{1,0:T(1,128)}', space=vmem, size = 0x12000, scoped, tag = 'internal scratch']
  #allocation2 [shape = 'f32[256,64]{1,0:T(8,128)}', space=vmem, size = 0x20000, scoped, tag = 'scratch operand']
  %s0 = inlined_call_operand.vmem [shape: bf16[2048,147], index: 0, kind: input, shape index: {}]
  %s1 = inlined_call_operand.vmem [shape: bf16[147,64], index: 1, kind: input, shape index: {}]
  %s2 = inlined_call_operand.vmem [shape: f32[2048,64], index: 2, kind: output, shape index: {0}]
  %s3 = inlined_call_operand.hbm [shape: f32[8,1,64], index: 3, kind: output, shape index: {1}]
  %s4 = inlined_call_operand.hbm [shape: f32[8,1,64], index: 4, kind: output, shape index: {2}]
  %5 = xla_tuple %s2, %s3, %s4
  %s6 = sld [smem:[#allocation0]]
  $region65: #{tpu_custom_call.1} parent=0
    _
  %s8 = ssub.s32 1, %s6
  %s9 = scalar_select 0, %s8, %s6
  $region1: #{tpu_custom_call.1} parent=0
    #allocation3 [shape = 'u8[1024]{0}', space=vmem, size = 0x400, scoped, tag = 'output window, operand 1']
    #allocation4 [shape = 's32[2]{0}', space=sflag, size = 0x8, scoped, tag = 'scoped memory for tpu_custom_call.1']
    #allocation5 [shape = 'u8[1024]{0}', space=vmem, size = 0x400, scoped, tag = 'output window, operand 2']
    #allocation6 [shape = 's32[2]{0}', space=sflag, size = 0x8, scoped, tag = 'scoped memory for tpu_custom_call.1']
    %10 = vsyncpa [#allocation4], 0
    %s11 = scalar_lea.sflag [#allocation4], 1
    %12 = vsyncpa %s11, 0
    %13 = vsyncpa [#allocation6], 0
    %s14 = scalar_lea.sflag [#allocation6], 1
    %15 = vsyncpa %s14, 0
    loop: start=0, step=1, limit=10
    $region2: #{tpu_custom_call.1} parent=1 // loop_pre_header
      _
    $region3: #{tpu_custom_call.1} parent=1 // loop_header
      %s17 = sphi 0, %s21
      %p18 = scmp.ge.s32.totalorder %s17, 10
      %s24 = sphi 0, %s43
      %s25 = sphi 0, %s39
      %s26 = sphi 0, %s35
      %s27 = sphi 0, %s24
      %s28 = sphi 0, %s25
      %s29 = sphi 0, %s26
      %s30 = sphi 0, %s27
      %s31 = sphi 0, %s28
      %s32 = sphi 0, %s29
      %s48 = sphi 0, %s50
      %s51 = sphi 0, %s48
      %s52 = sphi 0, %s51
      %s68 = sphi 0, %s52
      %s76 = sphi 0, %s78
      %s79 = sphi 0, %s76
      %s80 = sphi 0, %s79
      %s96 = sphi 0, %s80
      %s104 = sphi 0, %s106
      %s107 = sphi 0, %s104
      %s108 = sphi 0, %s107
      %s124 = sphi 0, %s108
      %s132 = sphi 0, %s134
      %s135 = sphi 0, %s132
      %s136 = sphi 0, %s135
      %s152 = sphi 0, %s136
      %s160 = sphi 0, %s162
      %s163 = sphi 0, %s160
      %s164 = sphi 0, %s163
      %s180 = sphi 0, %s164
    $region4: #{tpu_custom_call.1} parent=1 // loop_header_branch
      %20 = sbr.rel (%p18) target = $region8
    $region5: #{tpu_custom_call.1} parent=1 // loop_body
      %s22 = ssub.s32 %s17, 1
      %s23 = ssub.s32 %s17, 2
      %s33 = sadd.s32 1, %s26
      %p34 = scmp.ge.s32.totalorder %s33, 1
      %s35 = scalar_select %p34, 0, %s33
      %s36 = sadd.s32 1, %s25
      %s37 = scalar_select %p34, %s36, %s25
      %p38 = scmp.ge.s32.totalorder %s37, 1
      %s39 = scalar_select %p38, 0, %s37
      %s40 = sadd.s32 1, %s24
      %s41 = scalar_select %p38, %s40, %s24
      %p42 = scmp.ge.s32.totalorder %s41, 8
      %s43 = scalar_select %p42, 0, %s41
      %s44 = ssub.s32 %s24, %s43
      %s45 = ssub.s32 %s26, %s35
      %s46 = sor.u32 %s44, %s45
      %p47 = scmp.eq.s32.totalorder %s46, 0
      %s49 = sadd.s32 %s48, 1
      %s50 = scalar_select %p47, %s48, %s49
      %p53 = pneg %p47
      %p54 = scmp.eq.s32.totalorder %s17, 7
      %p55 = por %p53, %p54
      %p56 = scmp.ne.s32.totalorder %s48, %s51
      %p57 = scmp.eq.s32.totalorder %s17, 0
      %p58 = por %p56, %p57
      %p59 = scmp.ne.s32.totalorder %s48, %s51
      %p60 = scmp.eq.s32.totalorder %s22, 7
      %p61 = por %p59, %p60
      %p62 = scmp.ne.s32.totalorder %s51, %s52
      %p63 = scmp.eq.s32.totalorder %s22, 0
      %p64 = por %p62, %p63
      %p65 = scmp.ne.s32.totalorder %s51, %s52
      %p66 = scmp.eq.s32.totalorder %s23, 7
      %p67 = por %p65, %p66
      %p69 = scmp.ne.s32.totalorder %s52, %s68
      %p70 = scmp.eq.s32.totalorder %s23, 0
      %p71 = por %p69, %p70
      %s72 = ssub.s32 %s26, %s35
      %s73 = ssub.s32 %s25, %s39
      %s74 = sor.u32 %s72, %s73
      %p75 = scmp.eq.s32.totalorder %s74, 0
      %s77 = sadd.s32 %s76, 1
      %s78 = scalar_select %p75, %s76, %s77
      %p81 = pneg %p75
      %p82 = scmp.eq.s32.totalorder %s17, 7
      %p83 = por %p81, %p82
      %p84 = scmp.ne.s32.totalorder %s76, %s79
      %p85 = scmp.eq.s32.totalorder %s17, 0
      %p86 = por %p84, %p85
      %p87 = scmp.ne.s32.totalorder %s76, %s79
      %p88 = scmp.eq.s32.totalorder %s22, 7
      %p89 = por %p87, %p88
      %p90 = scmp.ne.s32.totalorder %s79, %s80
      %p91 = scmp.eq.s32.totalorder %s22, 0
      %p92 = por %p90, %p91
      %p93 = scmp.ne.s32.totalorder %s79, %s80
      %p94 = scmp.eq.s32.totalorder %s23, 7
      %p95 = por %p93, %p94
      %p97 = scmp.ne.s32.totalorder %s80, %s96
      %p98 = scmp.eq.s32.totalorder %s23, 0
      %p99 = por %p97, %p98
      %s100 = ssub.s32 %s24, %s43
      %s101 = ssub.s32 %s25, %s39
      %s102 = sor.u32 %s100, %s101
      %p103 = scmp.eq.s32.totalorder %s102, 0
      %s105 = sadd.s32 %s104, 1
      %s106 = scalar_select %p103, %s104, %s105
      %p109 = pneg %p103
      %p110 = scmp.eq.s32.totalorder %s17, 7
      %p111 = por %p109, %p110
      %p112 = scmp.ne.s32.totalorder %s104, %s107
      %p113 = scmp.eq.s32.totalorder %s17, 0
      %p114 = por %p112, %p113
      %p115 = scmp.ne.s32.totalorder %s104, %s107
      %p116 = scmp.eq.s32.totalorder %s22, 7
      %p117 = por %p115, %p116
      %p118 = scmp.ne.s32.totalorder %s107, %s108
      %p119 = scmp.eq.s32.totalorder %s22, 0
      %p120 = por %p118, %p119
      %p121 = scmp.ne.s32.totalorder %s107, %s108
      %p122 = scmp.eq.s32.totalorder %s23, 7
      %p123 = por %p121, %p122
      %p125 = scmp.ne.s32.totalorder %s108, %s124
      %p126 = scmp.eq.s32.totalorder %s23, 0
      %p127 = por %p125, %p126
      %s128 = ssub.s32 %s24, %s43
      %s129 = ssub.s32 %s25, %s39
      %s130 = sor.u32 %s128, %s129
      %p131 = scmp.eq.s32.totalorder %s130, 0
      %s133 = sadd.s32 %s132, 1
      %s134 = scalar_select %p131, %s132, %s133
      %p137 = pneg %p131
      %p138 = scmp.eq.s32.totalorder %s17, 7
      %p139 = por %p137, %p138
      %p140 = scmp.ne.s32.totalorder %s132, %s135
      %p141 = scmp.eq.s32.totalorder %s17, 0
      %p142 = por %p140, %p141
      %p143 = scmp.ne.s32.totalorder %s132, %s135
      %p144 = scmp.eq.s32.totalorder %s22, 7
      %p145 = por %p143, %p144
      %p146 = scmp.ne.s32.totalorder %s135, %s136
      %p147 = scmp.eq.s32.totalorder %s22, 0
      %p148 = por %p146, %p147
      %p149 = scmp.ne.s32.totalorder %s135, %s136
      %p150 = scmp.eq.s32.totalorder %s23, 7
      %p151 = por %p149, %p150
      %p153 = scmp.ne.s32.totalorder %s136, %s152
      %p154 = scmp.eq.s32.totalorder %s23, 0
      %p155 = por %p153, %p154
      %s156 = ssub.s32 %s24, %s43
      %s157 = ssub.s32 %s25, %s39
      %s158 = sor.u32 %s156, %s157
      %p159 = scmp.eq.s32.totalorder %s158, 0
      %s161 = sadd.s32 %s160, 1
      %s162 = scalar_select %p159, %s160, %s161
      %p165 = pneg %p159
      %p166 = scmp.eq.s32.totalorder %s17, 7
      %p167 = por %p165, %p166
      %p168 = scmp.ne.s32.totalorder %s160, %s163
      %p169 = scmp.eq.s32.totalorder %s17, 0
      %p170 = por %p168, %p169
      %p171 = scmp.ne.s32.totalorder %s160, %s163
      %p172 = scmp.eq.s32.totalorder %s22, 7
      %p173 = por %p171, %p172
      %p174 = scmp.ne.s32.totalorder %s163, %s164
      %p175 = scmp.eq.s32.totalorder %s22, 0
      %p176 = por %p174, %p175
      %p177 = scmp.ne.s32.totalorder %s163, %s164
      %p178 = scmp.eq.s32.totalorder %s23, 7
      %p179 = por %p177, %p178
      %p181 = scmp.ne.s32.totalorder %s164, %s180
      %p182 = scmp.eq.s32.totalorder %s23, 0
      %p183 = por %p181, %p182
      %p184 = scmp.le.s32.totalorder 1, %s17
      %p185 = scmp.lt.s32.totalorder %s17, 9
      %p186 = pnand %p184, %p185
      %p187 = pneg %p186
      // Predicated region
      $region9: #{tpu_custom_call.1} parent=5 // pred_check
        _
      $region10: #{tpu_custom_call.1} parent=5 // pred_check_branch
        %189 = sbr.rel (%p186) target = $region12
      $region11: #{tpu_custom_call.1} parent=5 // pred_region
        %s190 = ssub.s32 %s17, 1
        // Predicated region
        $region13: #{tpu_custom_call.1} parent=11 // pred_check
          %p191 = pneg %p92
        $region14: #{tpu_custom_call.1} parent=11 // pred_check_branch
          %193 = sbr.rel (%p191) target = $region16
        $region15: #{tpu_custom_call.1} parent=11 // pred_region
          %s194 = smul.u32 19, %s29
          %p195 = scmp.lt.s32.totalorder %s194, 18
          %s196 = scalar_select %p195, %s194, 18
          %p197 = scmp.lt.s32.totalorder %s28, 0
          %s198 = scalar_select %p197, %s28, 0
          %s199 = sadd.s32 %s198, %s196
          %s200 = smul.addr %s199, 4
          %s201 = scalar_lea.vmem %s1, %s200
          %s202 = smul.u32 19, %s29
        $region16: #{tpu_custom_call.1} parent=11 // pred_fallthru
          _
      $region12: #{tpu_custom_call.1} parent=5 // pred_fallthru
        _
      %p203 = scmp.lt.s32.totalorder %s17, 8
      // Predicated region
      $region17: #{tpu_custom_call.1} parent=5 // pred_check
        %p204 = pneg %p203
      $region18: #{tpu_custom_call.1} parent=5 // pred_check_branch
        %206 = sbr.rel (%p204) target = $region20
      $region19: #{tpu_custom_call.1} parent=5 // pred_region
        // Predicated region
        $region21: #{tpu_custom_call.1} parent=19 // pred_check
          %p207 = pneg %p58
        $region22: #{tpu_custom_call.1} parent=19 // pred_check_branch
          %209 = sbr.rel (%p207) target = $region24
        $region23: #{tpu_custom_call.1} parent=19 // pred_region
          %s210 = smul.u32 32, %s24
          %s211 = smul.u32 2, %s26
          %p212 = scmp.lt.s32.totalorder %s210, 255
          %s213 = scalar_select %p212, %s210, 255
          %p214 = scmp.lt.s32.totalorder %s211, 1
          %s215 = scalar_select %p214, %s211, 1
          %s216 = smul.addr %s213, 2
          %s217 = sadd.s32 %s215, %s216
          %s218 = smul.addr %s217, 4
          %s219 = scalar_lea.vmem %s0, %s218
          %s220 = smul.u32 32, %s24
          %s221 = smul.u32 2, %s26
        $region24: #{tpu_custom_call.1} parent=19 // pred_fallthru
          _
      $region20: #{tpu_custom_call.1} parent=5 // pred_fallthru
        _
      %p222 = scmp.le.s32.totalorder 1, %s17
      %p223 = scmp.lt.s32.totalorder %s17, 9
      %p224 = pnand %p222, %p223
      %p225 = pneg %p224
      // Predicated region
      $region25: #{tpu_custom_call.1} parent=5 // pred_check
        _
      $region26: #{tpu_custom_call.1} parent=5 // pred_check_branch
        %227 = sbr.rel (%p224) target = $region28
      $region27: #{tpu_custom_call.1} parent=5 // pred_region
        %s228 = ssub.s32 %s17, 1
        %s229 = smul.u32 32, %s27
        %s230 = smul.u32 2, %s29
        %p231 = scmp.lt.s32.totalorder %s229, 255
        %s232 = scalar_select %p231, %s229, 255
        %p233 = scmp.lt.s32.totalorder %s230, 1
        %s234 = scalar_select %p233, %s230, 1
        %s235 = smul.addr %s232, 2
        %s236 = sadd.s32 %s234, %s235
        %s237 = smul.addr %s236, 4
        %s238 = scalar_lea.vmem %s0, %s237
        %p239 = pneg %p64
        %p240 = pneg %p61
        %s241 = smul.u32 19, %s29
        %p242 = scmp.lt.s32.totalorder %s241, 18
        %s243 = scalar_select %p242, %s241, 18
        %p244 = scmp.lt.s32.totalorder %s28, 0
        %s245 = scalar_select %p244, %s28, 0
        %s246 = sadd.s32 %s245, %s243
        %s247 = smul.addr %s246, 4
        %s248 = scalar_lea.vmem %s1, %s247
        %p249 = pneg %p92
        %p250 = pneg %p89
        %p251 = pneg %p120
        %p252 = pneg %p117
        %s253 = smul.u32 32, %s27
        %p254 = scmp.lt.s32.totalorder %s253, 255
        %s255 = scalar_select %p254, %s253, 255
        %p256 = scmp.lt.s32.totalorder %s28, 0
        %s257 = scalar_select %p256, %s28, 0
        %s258 = sadd.s32 %s257, %s255
        %s259 = smul.addr %s258, 8
        %s260 = scalar_lea.vmem %s2, %s259
        %p261 = pneg %p148
        %p262 = pneg %p145
        %s263 = sand.u32 %s135, 1
        %s264 = scalar_lea.sflag [#allocation4], %s263
        %s265 = sand.u32 %s135, 1
        %s266 = scalar_lea.vmem [#allocation3], %s265
        %p267 = pneg %p176
        %p268 = pneg %p173
        %s269 = sand.u32 %s163, 1
        %s270 = scalar_lea.sflag [#allocation6], %s269
        %s271 = sand.u32 %s163, 1
        %s272 = scalar_lea.vmem [#allocation5], %s271
        %s273 = smul.u32 32, %s27
        %s274 = smul.u32 2, %s29
        %p275 = scmp.lt.s32.totalorder %s273, 255
        %s276 = scalar_select %p275, %s273, 255
        %p277 = scmp.lt.s32.totalorder %s274, 1
        %s278 = scalar_select %p277, %s274, 1
        %s279 = smul.addr %s276, 2
        %s280 = sadd.s32 %s278, %s279
        %s281 = smul.addr %s280, 4
        %s282 = scalar_lea.vmem %s0, %s281
        %s283 = smul.u32 32, %s27
        %s284 = smul.u32 2, %s29
        %s285 = smul.u32 19, %s29
        %p286 = scmp.lt.s32.totalorder %s285, 18
        %s287 = scalar_select %p286, %s285, 18
        %p288 = scmp.lt.s32.totalorder %s28, 0
        %s289 = scalar_select %p288, %s28, 0
        %s290 = sadd.s32 %s289, %s287
        %s291 = smul.addr %s290, 4
        %s292 = scalar_lea.vmem %s1, %s291
        %s293 = smul.u32 19, %s29
        %s294 = smul.u32 32, %s27
        %p295 = scmp.lt.s32.totalorder %s294, 255
        %s296 = scalar_select %p295, %s294, 255
        %p297 = scmp.lt.s32.totalorder %s28, 0
        %s298 = scalar_select %p297, %s28, 0
        %s299 = sadd.s32 %s298, %s296
        %s300 = smul.addr %s299, 8
        %s301 = scalar_lea.vmem %s2, %s300
        %s302 = smul.u32 32, %s27
        %p304 = scmp.eq.s32.totalorder %s29, 0
        // Predicated region
        $region29: #{tpu_custom_call.1} parent=27 // pred_check
          %p305 = pneg %p304
        $region30: #{tpu_custom_call.1} parent=27 // pred_check_branch
          %307 = sbr.rel (%p305) target = $region32
        $region31: #{tpu_custom_call.1} parent=27 // pred_region
          %vm308 = vcmask 523264
          %309 = vst.msk [vmem:[#allocation2] sm:$0xff] %vm308, 0.0
          %310 = vst.msk [vmem:[#allocation2 + $0x8] sm:$0xff] %vm308, 0.0
          %311 = vst.msk [vmem:[#allocation2 + $0x10] sm:$0xff] %vm308, 0.0
          %312 = vst.msk [vmem:[#allocation2 + $0x18] sm:$0xff] %vm308, 0.0
          %313 = vst.msk [vmem:[#allocation2 + $0x20] sm:$0xff] %vm308, 0.0
          %314 = vst.msk [vmem:[#allocation2 + $0x28] sm:$0xff] %vm308, 0.0
          %315 = vst.msk [vmem:[#allocation2 + $0x30] sm:$0xff] %vm308, 0.0
          %316 = vst.msk [vmem:[#allocation2 + $0x38] sm:$0xff] %vm308, 0.0
          %317 = vst.msk [vmem:[#allocation2 + $0x40] sm:$0xff] %vm308, 0.0
          %318 = vst.msk [vmem:[#allocation2 + $0x48] sm:$0xff] %vm308, 0.0
          %319 = vst.msk [vmem:[#allocation2 + $0x50] sm:$0xff] %vm308, 0.0
          %320 = vst.msk [vmem:[#allocation2 + $0x58] sm:$0xff] %vm308, 0.0
          %321 = vst.msk [vmem:[#allocation2 + $0x60] sm:$0xff] %vm308, 0.0
          %322 = vst.msk [vmem:[#allocation2 + $0x68] sm:$0xff] %vm308, 0.0
          %323 = vst.msk [vmem:[#allocation2 + $0x70] sm:$0xff] %vm308, 0.0
          %324 = vst.msk [vmem:[#allocation2 + $0x78] sm:$0xff] %vm308, 0.0
          %325 = vst.msk [vmem:[#allocation2 + $0x80] sm:$0xff] %vm308, 0.0
          %326 = vst.msk [vmem:[#allocation2 + $0x88] sm:$0xff] %vm308, 0.0
          %327 = vst.msk [vmem:[#allocation2 + $0x90] sm:$0xff] %vm308, 0.0
          %328 = vst.msk [vmem:[#allocation2 + $0x98] sm:$0xff] %vm308, 0.0
          %329 = vst.msk [vmem:[#allocation2 + $0xa0] sm:$0xff] %vm308, 0.0
          %330 = vst.msk [vmem:[#allocation2 + $0xa8] sm:$0xff] %vm308, 0.0
          %331 = vst.msk [vmem:[#allocation2 + $0xb0] sm:$0xff] %vm308, 0.0
          %332 = vst.msk [vmem:[#allocation2 + $0xb8] sm:$0xff] %vm308, 0.0
          %333 = vst.msk [vmem:[#allocation2 + $0xc0] sm:$0xff] %vm308, 0.0
          %334 = vst.msk [vmem:[#allocation2 + $0xc8] sm:$0xff] %vm308, 0.0
          %335 = vst.msk [vmem:[#allocation2 + $0xd0] sm:$0xff] %vm308, 0.0
          %336 = vst.msk [vmem:[#allocation2 + $0xd8] sm:$0xff] %vm308, 0.0
          %337 = vst.msk [vmem:[#allocation2 + $0xe0] sm:$0xff] %vm308, 0.0
          %338 = vst.msk [vmem:[#allocation2 + $0xe8] sm:$0xff] %vm308, 0.0
          %339 = vst.msk [vmem:[#allocation2 + $0xf0] sm:$0xff] %vm308, 0.0
          %340 = vst.msk [vmem:[#allocation2 + $0xf8] sm:$0xff] %vm308, 0.0
        $region32: #{tpu_custom_call.1} parent=27 // pred_fallthru
          _
        %v341 = vld [vmem:[#allocation2] sm:$0xff]
        %v342 = vld [vmem:[#allocation2 + $0x8] sm:$0xff]
        %v343 = vld [vmem:[#allocation2 + $0x10] sm:$0xff]
        %v344 = vld [vmem:[#allocation2 + $0x18] sm:$0xff]
        %v345 = vld [vmem:[#allocation2 + $0x20] sm:$0xff]
        %v346 = vld [vmem:[#allocation2 + $0x28] sm:$0xff]
        %v347 = vld [vmem:[#allocation2 + $0x30] sm:$0xff]
        %v348 = vld [vmem:[#allocation2 + $0x38] sm:$0xff]
        %v349 = vld [vmem:[#allocation2 + $0x40] sm:$0xff]
        %v350 = vld [vmem:[#allocation2 + $0x48] sm:$0xff]
        %v351 = vld [vmem:[#allocation2 + $0x50] sm:$0xff]
        %v352 = vld [vmem:[#allocation2 + $0x58] sm:$0xff]
        %v353 = vld [vmem:[#allocation2 + $0x60] sm:$0xff]
        %v354 = vld [vmem:[#allocation2 + $0x68] sm:$0xff]
        %v355 = vld [vmem:[#allocation2 + $0x70] sm:$0xff]
        %v356 = vld [vmem:[#allocation2 + $0x78] sm:$0xff]
        %v357 = vld [vmem:[#allocation2 + $0x80] sm:$0xff]
        %v358 = vld [vmem:[#allocation2 + $0x88] sm:$0xff]
        %v359 = vld [vmem:[#allocation2 + $0x90] sm:$0xff]
        %v360 = vld [vmem:[#allocation2 + $0x98] sm:$0xff]
        %v361 = vld [vmem:[#allocation2 + $0xa0] sm:$0xff]
        %v362 = vld [vmem:[#allocation2 + $0xa8] sm:$0xff]
        %v363 = vld [vmem:[#allocation2 + $0xb0] sm:$0xff]
        %v364 = vld [vmem:[#allocation2 + $0xb8] sm:$0xff]
        %v365 = vld [vmem:[#allocation2 + $0xc0] sm:$0xff]
        %v366 = vld [vmem:[#allocation2 + $0xc8] sm:$0xff]
        %v367 = vld [vmem:[#allocation2 + $0xd0] sm:$0xff]
        %v368 = vld [vmem:[#allocation2 + $0xd8] sm:$0xff]
        %v369 = vld [vmem:[#allocation2 + $0xe0] sm:$0xff]
        %v370 = vld [vmem:[#allocation2 + $0xe8] sm:$0xff]
        %v371 = vld [vmem:[#allocation2 + $0xf0] sm:$0xff]
        %v372 = vld [vmem:[#allocation2 + $0xf8] sm:$0xff]
        %v373 = vld [vmem:[%s282] sm:$0xff]
        %v374 = vld [vmem:[%s282 + $0x8] sm:$0xff]
        %v375 = vld [vmem:[%s282 + $0x10] sm:$0xff]
        %v376 = vld [vmem:[%s282 + $0x18] sm:$0xff]
        %v377 = vld [vmem:[%s282 + $0x20] sm:$0xff]
        %v378 = vld [vmem:[%s282 + $0x28] sm:$0xff]
        %v379 = vld [vmem:[%s282 + $0x30] sm:$0xff]
        %v380 = vld [vmem:[%s282 + $0x38] sm:$0xff]
        %v381 = vld [vmem:[%s282 + $0x40] sm:$0xff]
        %v382 = vld [vmem:[%s282 + $0x48] sm:$0xff]
        %v383 = vld [vmem:[%s282 + $0x50] sm:$0xff]
        %v384 = vld [vmem:[%s282 + $0x58] sm:$0xff]
        %v385 = vld [vmem:[%s282 + $0x60] sm:$0xff]
        %v386 = vld [vmem:[%s282 + $0x68] sm:$0xff]
        %v387 = vld [vmem:[%s282 + $0x70] sm:$0xff]
        %v388 = vld [vmem:[%s282 + $0x78] sm:$0xff]
        %v389 = vld [vmem:[%s282 + $0x80] sm:$0xff]
        %v390 = vld [vmem:[%s282 + $0x88] sm:$0xff]
        %v391 = vld [vmem:[%s282 + $0x90] sm:$0xff]
        %v392 = vld [vmem:[%s282 + $0x98] sm:$0xff]
        %v393 = vld [vmem:[%s282 + $0xa0] sm:$0xff]
        %v394 = vld [vmem:[%s282 + $0xa8] sm:$0xff]
        %v395 = vld [vmem:[%s282 + $0xb0] sm:$0xff]
        %v396 = vld [vmem:[%s282 + $0xb8] sm:$0xff]
        %v397 = vld [vmem:[%s282 + $0xc0] sm:$0xff]
        %v398 = vld [vmem:[%s282 + $0xc8] sm:$0xff]
        %v399 = vld [vmem:[%s282 + $0xd0] sm:$0xff]
        %v400 = vld [vmem:[%s282 + $0xd8] sm:$0xff]
        %v401 = vld [vmem:[%s282 + $0xe0] sm:$0xff]
        %v402 = vld [vmem:[%s282 + $0xe8] sm:$0xff]
        %v403 = vld [vmem:[%s282 + $0xf0] sm:$0xff]
        %v404 = vld [vmem:[%s282 + $0xf8] sm:$0xff]
        %v405 = vld [vmem:[%s292] sm:$0xf]
        %v406 = vld [vmem:[%s292 + $0x4] sm:$0xf]
        %v407 = vld [vmem:[%s292 + $0x8] sm:$0xf]
        %v408 = vld [vmem:[%s292 + $0xc] sm:$0xf]
        %v409 = vld [vmem:[%s292 + $0x10] sm:$0xf]
        %v410 = vld [vmem:[%s292 + $0x14] sm:$0xf]
        %v411 = vld [vmem:[%s292 + $0x18] sm:$0xf]
        %v412 = vld [vmem:[%s292 + $0x1c] sm:$0xf]
        %v413 = vld [vmem:[%s292 + $0x20] sm:$0xf]
        %v414 = vld [vmem:[%s292 + $0x24] sm:$0xf]
        %v415 = vld [vmem:[%s292 + $0x28] sm:$0xf]
        %v416 = vld [vmem:[%s292 + $0x2c] sm:$0xf]
        %v417 = vld [vmem:[%s292 + $0x30] sm:$0xf]
        %v418 = vld [vmem:[%s292 + $0x34] sm:$0xf]
        %v419 = vld [vmem:[%s292 + $0x38] sm:$0xf]
        %v420 = vld [vmem:[%s292 + $0x3c] sm:$0xf]
        %v421 = vld [vmem:[%s292 + $0x40] sm:$0xf]
        %v422 = vld [vmem:[%s292 + $0x44] sm:$0xf]
        %v423 = vld [vmem:[%s292 + $0x48] sm:$0x3]
        %v456 = vunpack.c.l.b16 %v373
        %v457 = vunpack.c.h.b16 %v373
        %v458 = vunpack.c.l.b16 %v374
        %v459 = vunpack.c.h.b16 %v374
        %v460 = vunpack.c.l.b16 %v375
        %v461 = vunpack.c.h.b16 %v375
        %v462 = vunpack.c.l.b16 %v376
        %v463 = vunpack.c.h.b16 %v376
        %v464 = vunpack.c.l.b16 %v377
        %v465 = vunpack.c.h.b16 %v377
        %v466 = vunpack.c.l.b16 %v378
        %v467 = vunpack.c.h.b16 %v378
        %v468 = vunpack.c.l.b16 %v379
        %v469 = vunpack.c.h.b16 %v379
        %v470 = vunpack.c.l.b16 %v380
        %v471 = vunpack.c.h.b16 %v380
        %v472 = vunpack.c.l.b16 %v381
        %v473 = vunpack.c.h.b16 %v381
        %v474 = vunpack.c.l.b16 %v382
        %v475 = vunpack.c.h.b16 %v382
        %v476 = vunpack.c.l.b16 %v383
        %v477 = vunpack.c.h.b16 %v383
        %v478 = vunpack.c.l.b16 %v384
        %v479 = vunpack.c.h.b16 %v384
        %v480 = vunpack.c.l.b16 %v385
        %v481 = vunpack.c.h.b16 %v385
        %v482 = vunpack.c.l.b16 %v386
        %v483 = vunpack.c.h.b16 %v386
        %v484 = vunpack.c.l.b16 %v387
        %v485 = vunpack.c.h.b16 %v387
        %v486 = vunpack.c.l.b16 %v388
        %v487 = vunpack.c.h.b16 %v388
        %v488 = vunpack.c.l.b16 %v389
        %v489 = vunpack.c.h.b16 %v389
        %v490 = vunpack.c.l.b16 %v390
        %v491 = vunpack.c.h.b16 %v390
        %v492 = vunpack.c.l.b16 %v391
        %v493 = vunpack.c.h.b16 %v391
        %v494 = vunpack.c.l.b16 %v392
        %v495 = vunpack.c.h.b16 %v392
        %v496 = vunpack.c.l.b16 %v393
        %v497 = vunpack.c.h.b16 %v393
        %v498 = vunpack.c.l.b16 %v394
        %v499 = vunpack.c.h.b16 %v394
        %v500 = vunpack.c.l.b16 %v395
        %v501 = vunpack.c.h.b16 %v395
        %v502 = vunpack.c.l.b16 %v396
        %v503 = vunpack.c.h.b16 %v396
        %v504 = vunpack.c.l.b16 %v397
        %v505 = vunpack.c.h.b16 %v397
        %v506 = vunpack.c.l.b16 %v398
        %v507 = vunpack.c.h.b16 %v398
        %v508 = vunpack.c.l.b16 %v399
        %v509 = vunpack.c.h.b16 %v399
        %v510 = vunpack.c.l.b16 %v400
        %v511 = vunpack.c.h.b16 %v400
        %v512 = vunpack.c.l.b16 %v401
        %v513 = vunpack.c.h.b16 %v401
        %v514 = vunpack.c.l.b16 %v402
        %v515 = vunpack.c.h.b16 %v402
        %v516 = vunpack.c.l.b16 %v403
        %v517 = vunpack.c.h.b16 %v403
        %v518 = vunpack.c.l.b16 %v404
        %v519 = vunpack.c.h.b16 %v404
        %v520 = vpack.c.b16 %v458, %v456
        %v521 = vpack.c.b16 %v459, %v457
        %v522 = vpack.c.b16 %v462, %v460
        %v523 = vpack.c.b16 %v463, %v461
        %v524 = vpack.c.b16 %v466, %v464
        %v525 = vpack.c.b16 %v467, %v465
        %v526 = vpack.c.b16 %v470, %v468
        %v527 = vpack.c.b16 %v471, %v469
        %v528 = vpack.c.b16 %v474, %v472
        %v529 = vpack.c.b16 %v475, %v473
        %v530 = vpack.c.b16 %v478, %v476
        %v531 = vpack.c.b16 %v479, %v477
        %v532 = vpack.c.b16 %v482, %v480
        %v533 = vpack.c.b16 %v483, %v481
        %v534 = vpack.c.b16 %v486, %v484
        %v535 = vpack.c.b16 %v487, %v485
        %v536 = vpack.c.b16 %v490, %v488
        %v537 = vpack.c.b16 %v491, %v489
        %v538 = vpack.c.b16 %v494, %v492
        %v539 = vpack.c.b16 %v495, %v493
        %v540 = vpack.c.b16 %v498, %v496
        %v541 = vpack.c.b16 %v499, %v497
        %v542 = vpack.c.b16 %v502, %v500
        %v543 = vpack.c.b16 %v503, %v501
        %v544 = vpack.c.b16 %v506, %v504
        %v545 = vpack.c.b16 %v507, %v505
        %v546 = vpack.c.b16 %v510, %v508
        %v547 = vpack.c.b16 %v511, %v509
        %v548 = vpack.c.b16 %v514, %v512
        %v549 = vpack.c.b16 %v515, %v513
        %v550 = vpack.c.b16 %v518, %v516
        %v551 = vpack.c.b16 %v519, %v517
        %v587 = vunpack.c.l.b16 %v405
        %v588 = vunpack.c.l.b16 %v406
        %v589 = vunpack.c.l.b16 %v407
        %v590 = vunpack.c.l.b16 %v408
        %v591 = vunpack.c.l.b16 %v409
        %v592 = vunpack.c.l.b16 %v410
        %v593 = vunpack.c.l.b16 %v411
        %v594 = vunpack.c.l.b16 %v412
        %v595 = vunpack.c.l.b16 %v413
        %v596 = vunpack.c.l.b16 %v414
        %v597 = vunpack.c.l.b16 %v415
        %v598 = vunpack.c.l.b16 %v416
        %v599 = vunpack.c.l.b16 %v417
        %v600 = vunpack.c.l.b16 %v418
        %v601 = vunpack.c.l.b16 %v419
        %v602 = vunpack.c.l.b16 %v420
        %v603 = vunpack.c.l.b16 %v421
        %v604 = vunpack.c.l.b16 %v422
        %v605 = vunpack.c.l.b16 %v423
        %v606 = vpack.c.b16 %v588, %v587
        %v607 = vpack.c.b16 %v590, %v589
        %v608 = vpack.c.b16 %v592, %v591
        %v609 = vpack.c.b16 %v594, %v593
        %v610 = vpack.c.b16 %v596, %v595
        %v611 = vpack.c.b16 %v598, %v597
        %v612 = vpack.c.b16 %v600, %v599
        %v613 = vpack.c.b16 %v602, %v601
        %v614 = vpack.c.b16 %v604, %v603
        %v615 = vpack.c.b16 %v605, %v605
        %vm625 = vcmask 154624
        %v627 = vsel %vm625, %v521, 0
        %v630 = vsel %vm625, %v523, 0
        %v633 = vsel %vm625, %v525, 0
        %v636 = vsel %vm625, %v527, 0
        %v639 = vsel %vm625, %v529, 0
        %v642 = vsel %vm625, %v531, 0
        %v645 = vsel %vm625, %v533, 0
        %v648 = vsel %vm625, %v535, 0
        %v651 = vsel %vm625, %v537, 0
        %v654 = vsel %vm625, %v539, 0
        %v657 = vsel %vm625, %v541, 0
        %v660 = vsel %vm625, %v543, 0
        %v663 = vsel %vm625, %v545, 0
        %v666 = vsel %vm625, %v547, 0
        %v669 = vsel %vm625, %v549, 0
        %v672 = vsel %vm625, %v551, 0
        %vm674 = vcmask 1040384
        %vm675 = vcmask 1041408
        %v676 = vsel %vm674, 4294967295, 65535
        %v677 = vsel %vm675, %v676, 0
        %v679 = vand.u32 %v615, %v677
        %681 = vmatprep.subr.bf16.mxu0 0
        %682 = vmatpush1.bf16.msra.mxu0 %v606
        %683 = vmatprep.subr.bf16.mxu0 0
        %684 = vmatpush1.bf16.msra.mxu0 %v607
        %685 = vmatprep.subr.bf16.mxu0 0
        %686 = vmatpush1.bf16.msra.mxu0 %v608
        %687 = vmatprep.subr.bf16.mxu0 0
        %688 = vmatpush1.bf16.msra.mxu0 %v609
        %689 = vmatprep.subr.bf16.mxu0 0
        %690 = vmatpush1.bf16.msra.mxu0 %v610
        %691 = vmatprep.subr.bf16.mxu0 0
        %692 = vmatpush1.bf16.msra.mxu0 %v611
        %693 = vmatprep.subr.bf16.mxu0 0
        %694 = vmatpush1.bf16.msra.mxu0 %v612
        %695 = vmatprep.subr.bf16.mxu0 0
        %696 = vmatpush1.bf16.msra.mxu0 %v613
        %697 = vmatprep.subr.bf16.mxu0 0
        %698 = vmatpush1.bf16.msra.mxu0 %v614
        %699 = vmatprep.subr.bf16.mxu0 0
        %700 = vmatpush1.bf16.msra.mxu0 %v679
        %701 = vmatprep.subr.bf16.mxu0 0
        %702 = vmatpush1.bf16.msra.mxu0 0
        %703 = vmatprep.subr.bf16.mxu0 0
        %704 = vmatpush1.bf16.msra.mxu0 0
        %705 = vmatprep.subr.bf16.mxu0 0
        %706 = vmatpush1.bf16.msra.mxu0 0
        %707 = vmatprep.subr.bf16.mxu0 0
        %708 = vmatpush1.bf16.msra.mxu0 0
        %709 = vmatprep.subr.bf16.mxu0 0
        %710 = vmatpush1.bf16.msra.mxu0 0
        %711 = vmatprep.subr.bf16.mxu0 0
        %712 = vmatpush1.bf16.msra.mxu0 0
        %713 = vmatprep.mubr.bf16.mxu0 %v627
        %714 = vmatmul.mubr.bf16.gmra.mrb[0].mxu0 %v520
        %v715 = vpop.f32.mrb[0].mxu0
        %v716 = vadd.f32 0.0, %v715
        %v717 = vpop.f32.mrb[0].mxu0
        %v718 = vpop.f32.mrb[0].mxu0
        %v719 = vadd.f32 0.0, %v718
        %v720 = vpop.f32.mrb[0].mxu0
        %721 = vmatprep.mubr.bf16.mxu0 %v630
        %722 = vmatmul.mubr.bf16.gmra.mrb[0].mxu0 %v522
        %v723 = vpop.f32.mrb[0].mxu0
        %v724 = vadd.f32 0.0, %v723
        %v725 = vpop.f32.mrb[0].mxu0
        %v726 = vpop.f32.mrb[0].mxu0
        %v727 = vadd.f32 0.0, %v726
        %v728 = vpop.f32.mrb[0].mxu0
        %729 = vmatprep.mubr.bf16.mxu0 %v633
        %730 = vmatmul.mubr.bf16.gmra.mrb[0].mxu0 %v524
        %v731 = vpop.f32.mrb[0].mxu0
        %v732 = vadd.f32 0.0, %v731
        %v733 = vpop.f32.mrb[0].mxu0
        %v734 = vpop.f32.mrb[0].mxu0
        %v735 = vadd.f32 0.0, %v734
        %v736 = vpop.f32.mrb[0].mxu0
        %737 = vmatprep.mubr.bf16.mxu0 %v636
        %738 = vmatmul.mubr.bf16.gmra.mrb[0].mxu0 %v526
        %v739 = vpop.f32.mrb[0].mxu0
        %v740 = vadd.f32 0.0, %v739
        %v741 = vpop.f32.mrb[0].mxu0
        %v742 = vpop.f32.mrb[0].mxu0
        %v743 = vadd.f32 0.0, %v742
        %v744 = vpop.f32.mrb[0].mxu0
        %745 = vmatprep.mubr.bf16.mxu0 %v639
        %746 = vmatmul.mubr.bf16.gmra.mrb[0].mxu0 %v528
        %v747 = vpop.f32.mrb[0].mxu0
        %v748 = vadd.f32 0.0, %v747
        %v749 = vpop.f32.mrb[0].mxu0
        %v750 = vpop.f32.mrb[0].mxu0
        %v751 = vadd.f32 0.0, %v750
        %v752 = vpop.f32.mrb[0].mxu0
        %753 = vmatprep.mubr.bf16.mxu0 %v642
        %754 = vmatmul.mubr.bf16.gmra.mrb[0].mxu0 %v530
        %v755 = vpop.f32.mrb[0].mxu0
        %v756 = vadd.f32 0.0, %v755
        %v757 = vpop.f32.mrb[0].mxu0
        %v758 = vpop.f32.mrb[0].mxu0
        %v759 = vadd.f32 0.0, %v758
        %v760 = vpop.f32.mrb[0].mxu0
        %761 = vmatprep.mubr.bf16.mxu0 %v645
        %762 = vmatmul.mubr.bf16.gmra.mrb[0].mxu0 %v532
        %v763 = vpop.f32.mrb[0].mxu0
        %v764 = vadd.f32 0.0, %v763
        %v765 = vpop.f32.mrb[0].mxu0
        %v766 = vpop.f32.mrb[0].mxu0
        %v767 = vadd.f32 0.0, %v766
        %v768 = vpop.f32.mrb[0].mxu0
        %769 = vmatprep.mubr.bf16.mxu0 %v648
        %770 = vmatmul.mubr.bf16.gmra.mrb[0].mxu0 %v534
        %v771 = vpop.f32.mrb[0].mxu0
        %v772 = vadd.f32 0.0, %v771
        %v773 = vpop.f32.mrb[0].mxu0
        %v774 = vpop.f32.mrb[0].mxu0
        %v775 = vadd.f32 0.0, %v774
        %v776 = vpop.f32.mrb[0].mxu0
        %777 = vmatprep.mubr.bf16.mxu0 %v651
        %778 = vmatmul.mubr.bf16.gmra.mrb[0].mxu0 %v536
        %v779 = vpop.f32.mrb[0].mxu0
        %v780 = vadd.f32 0.0, %v779
        %v781 = vpop.f32.mrb[0].mxu0
        %v782 = vpop.f32.mrb[0].mxu0
        %v783 = vadd.f32 0.0, %v782
        %v784 = vpop.f32.mrb[0].mxu0
        %785 = vmatprep.mubr.bf16.mxu0 %v654
        %786 = vmatmul.mubr.bf16.gmra.mrb[0].mxu0 %v538
        %v787 = vpop.f32.mrb[0].mxu0
        %v788 = vadd.f32 0.0, %v787
        %v789 = vpop.f32.mrb[0].mxu0
        %v790 = vpop.f32.mrb[0].mxu0
        %v791 = vadd.f32 0.0, %v790
        %v792 = vpop.f32.mrb[0].mxu0
        %793 = vmatprep.mubr.bf16.mxu0 %v657
        %794 = vmatmul.mubr.bf16.gmra.mrb[0].mxu0 %v540
        %v795 = vpop.f32.mrb[0].mxu0
        %v796 = vadd.f32 0.0, %v795
        %v797 = vpop.f32.mrb[0].mxu0
        %v798 = vpop.f32.mrb[0].mxu0
        %v799 = vadd.f32 0.0, %v798
        %v800 = vpop.f32.mrb[0].mxu0
        %801 = vmatprep.mubr.bf16.mxu0 %v660
        %802 = vmatmul.mubr.bf16.gmra.mrb[0].mxu0 %v542
        %v803 = vpop.f32.mrb[0].mxu0
        %v804 = vadd.f32 0.0, %v803
        %v805 = vpop.f32.mrb[0].mxu0
        %v806 = vpop.f32.mrb[0].mxu0
        %v807 = vadd.f32 0.0, %v806
        %v808 = vpop.f32.mrb[0].mxu0
        %809 = vmatprep.mubr.bf16.mxu0 %v663
        %810 = vmatmul.mubr.bf16.gmra.mrb[0].mxu0 %v544
        %v811 = vpop.f32.mrb[0].mxu0
        %v812 = vadd.f32 0.0, %v811
        %v813 = vpop.f32.mrb[0].mxu0
        %v814 = vpop.f32.mrb[0].mxu0
        %v815 = vadd.f32 0.0, %v814
        %v816 = vpop.f32.mrb[0].mxu0
        %817 = vmatprep.mubr.bf16.mxu0 %v666
        %818 = vmatmul.mubr.bf16.gmra.mrb[0].mxu0 %v546
        %v819 = vpop.f32.mrb[0].mxu0
        %v820 = vadd.f32 0.0, %v819
        %v821 = vpop.f32.mrb[0].mxu0
        %v822 = vpop.f32.mrb[0].mxu0
        %v823 = vadd.f32 0.0, %v822
        %v824 = vpop.f32.mrb[0].mxu0
        %825 = vmatprep.mubr.bf16.mxu0 %v669
        %826 = vmatmul.mubr.bf16.gmra.mrb[0].mxu0 %v548
        %v827 = vpop.f32.mrb[0].mxu0
        %v828 = vadd.f32 0.0, %v827
        %v829 = vpop.f32.mrb[0].mxu0
        %v830 = vpop.f32.mrb[0].mxu0
        %v831 = vadd.f32 0.0, %v830
        %v832 = vpop.f32.mrb[0].mxu0
        %833 = vmatprep.mubr.bf16.mxu0 %v672
        %834 = vmatmul.mubr.bf16.gmra.mrb[0].mxu0 %v550
        %v835 = vpop.f32.mrb[0].mxu0
        %v836 = vadd.f32 0.0, %v835
        %v837 = vpop.f32.mrb[0].mxu0
        %v838 = vpop.f32.mrb[0].mxu0
        %v839 = vadd.f32 0.0, %v838
        %v840 = vpop.f32.mrb[0].mxu0
        %841 = vdwg.mxu0
        %v842 = vadd.f32 %v341, %v716
        %v843 = vadd.f32 %v342, %v719
        %v844 = vadd.f32 %v343, %v724
        %v845 = vadd.f32 %v344, %v727
        %v846 = vadd.f32 %v345, %v732
        %v847 = vadd.f32 %v346, %v735
        %v848 = vadd.f32 %v347, %v740
        %v849 = vadd.f32 %v348, %v743
        %v850 = vadd.f32 %v349, %v748
        %v851 = vadd.f32 %v350, %v751
        %v852 = vadd.f32 %v351, %v756
        %v853 = vadd.f32 %v352, %v759
        %v854 = vadd.f32 %v353, %v764
        %v855 = vadd.f32 %v354, %v767
        %v856 = vadd.f32 %v355, %v772
        %v857 = vadd.f32 %v356, %v775
        %v858 = vadd.f32 %v357, %v780
        %v859 = vadd.f32 %v358, %v783
        %v860 = vadd.f32 %v359, %v788
        %v861 = vadd.f32 %v360, %v791
        %v862 = vadd.f32 %v361, %v796
        %v863 = vadd.f32 %v362, %v799
        %v864 = vadd.f32 %v363, %v804
        %v865 = vadd.f32 %v364, %v807
        %v866 = vadd.f32 %v365, %v812
        %v867 = vadd.f32 %v366, %v815
        %v868 = vadd.f32 %v367, %v820
        %v869 = vadd.f32 %v368, %v823
        %v870 = vadd.f32 %v369, %v828
        %v871 = vadd.f32 %v370, %v831
        %v872 = vadd.f32 %v371, %v836
        %v873 = vadd.f32 %v372, %v839
        %vm874 = vcmask 523264
        %875 = vst.msk [vmem:[#allocation2] sm:$0xff] %vm874, %v842
        %876 = vst.msk [vmem:[#allocation2 + $0x8] sm:$0xff] %vm874, %v843
        %877 = vst.msk [vmem:[#allocation2 + $0x10] sm:$0xff] %vm874, %v844
        %878 = vst.msk [vmem:[#allocation2 + $0x18] sm:$0xff] %vm874, %v845
        %879 = vst.msk [vmem:[#allocation2 + $0x20] sm:$0xff] %vm874, %v846
        %880 = vst.msk [vmem:[#allocation2 + $0x28] sm:$0xff] %vm874, %v847
        %881 = vst.msk [vmem:[#allocation2 + $0x30] sm:$0xff] %vm874, %v848
        %882 = vst.msk [vmem:[#allocation2 + $0x38] sm:$0xff] %vm874, %v849
        %883 = vst.msk [vmem:[#allocation2 + $0x40] sm:$0xff] %vm874, %v850
        %884 = vst.msk [vmem:[#allocation2 + $0x48] sm:$0xff] %vm874, %v851
        %885 = vst.msk [vmem:[#allocation2 + $0x50] sm:$0xff] %vm874, %v852
        %886 = vst.msk [vmem:[#allocation2 + $0x58] sm:$0xff] %vm874, %v853
        %887 = vst.msk [vmem:[#allocation2 + $0x60] sm:$0xff] %vm874, %v854
        %888 = vst.msk [vmem:[#allocation2 + $0x68] sm:$0xff] %vm874, %v855
        %889 = vst.msk [vmem:[#allocation2 + $0x70] sm:$0xff] %vm874, %v856
        %890 = vst.msk [vmem:[#allocation2 + $0x78] sm:$0xff] %vm874, %v857
        %891 = vst.msk [vmem:[#allocation2 + $0x80] sm:$0xff] %vm874, %v858
        %892 = vst.msk [vmem:[#allocation2 + $0x88] sm:$0xff] %vm874, %v859
        %893 = vst.msk [vmem:[#allocation2 + $0x90] sm:$0xff] %vm874, %v860
        %894 = vst.msk [vmem:[#allocation2 + $0x98] sm:$0xff] %vm874, %v861
        %895 = vst.msk [vmem:[#allocation2 + $0xa0] sm:$0xff] %vm874, %v862
        %896 = vst.msk [vmem:[#allocation2 + $0xa8] sm:$0xff] %vm874, %v863
        %897 = vst.msk [vmem:[#allocation2 + $0xb0] sm:$0xff] %vm874, %v864
        %898 = vst.msk [vmem:[#allocation2 + $0xb8] sm:$0xff] %vm874, %v865
        %899 = vst.msk [vmem:[#allocation2 + $0xc0] sm:$0xff] %vm874, %v866
        %900 = vst.msk [vmem:[#allocation2 + $0xc8] sm:$0xff] %vm874, %v867
        %901 = vst.msk [vmem:[#allocation2 + $0xd0] sm:$0xff] %vm874, %v868
        %902 = vst.msk [vmem:[#allocation2 + $0xd8] sm:$0xff] %vm874, %v869
        %903 = vst.msk [vmem:[#allocation2 + $0xe0] sm:$0xff] %vm874, %v870
        %904 = vst.msk [vmem:[#allocation2 + $0xe8] sm:$0xff] %vm874, %v871
        %905 = vst.msk [vmem:[#allocation2 + $0xf0] sm:$0xff] %vm874, %v872
        %906 = vst.msk [vmem:[#allocation2 + $0xf8] sm:$0xff] %vm874, %v873
        // Predicated region
        $region33: #{tpu_custom_call.1} parent=27 // pred_check
          %p907 = pneg %p304
        $region34: #{tpu_custom_call.1} parent=27 // pred_check_branch
          %909 = sbr.rel (%p907) target = $region36
        $region35: #{tpu_custom_call.1} parent=27 // pred_region
          %v910 = vld [vmem:[#allocation2] sm:$0xff]
          %v911 = vld [vmem:[#allocation2 + $0x8] sm:$0xff]
          %v912 = vld [vmem:[#allocation2 + $0x10] sm:$0xff]
          %v913 = vld [vmem:[#allocation2 + $0x18] sm:$0xff]
          %v914 = vld [vmem:[#allocation2 + $0x20] sm:$0xff]
          %v915 = vld [vmem:[#allocation2 + $0x28] sm:$0xff]
          %v916 = vld [vmem:[#allocation2 + $0x30] sm:$0xff]
          %v917 = vld [vmem:[#allocation2 + $0x38] sm:$0xff]
          %v918 = vld [vmem:[#allocation2 + $0x40] sm:$0xff]
          %v919 = vld [vmem:[#allocation2 + $0x48] sm:$0xff]
          %v920 = vld [vmem:[#allocation2 + $0x50] sm:$0xff]
          %v921 = vld [vmem:[#allocation2 + $0x58] sm:$0xff]
          %v922 = vld [vmem:[#allocation2 + $0x60] sm:$0xff]
          %v923 = vld [vmem:[#allocation2 + $0x68] sm:$0xff]
          %v924 = vld [vmem:[#allocation2 + $0x70] sm:$0xff]
          %v925 = vld [vmem:[#allocation2 + $0x78] sm:$0xff]
          %v926 = vld [vmem:[#allocation2 + $0x80] sm:$0xff]
          %v927 = vld [vmem:[#allocation2 + $0x88] sm:$0xff]
          %v928 = vld [vmem:[#allocation2 + $0x90] sm:$0xff]
          %v929 = vld [vmem:[#allocation2 + $0x98] sm:$0xff]
          %v930 = vld [vmem:[#allocation2 + $0xa0] sm:$0xff]
          %v931 = vld [vmem:[#allocation2 + $0xa8] sm:$0xff]
          %v932 = vld [vmem:[#allocation2 + $0xb0] sm:$0xff]
          %v933 = vld [vmem:[#allocation2 + $0xb8] sm:$0xff]
          %v934 = vld [vmem:[#allocation2 + $0xc0] sm:$0xff]
          %v935 = vld [vmem:[#allocation2 + $0xc8] sm:$0xff]
          %v936 = vld [vmem:[#allocation2 + $0xd0] sm:$0xff]
          %v937 = vld [vmem:[#allocation2 + $0xd8] sm:$0xff]
          %v938 = vld [vmem:[#allocation2 + $0xe0] sm:$0xff]
          %v939 = vld [vmem:[#allocation2 + $0xe8] sm:$0xff]
          %v940 = vld [vmem:[#allocation2 + $0xf0] sm:$0xff]
          %v941 = vld [vmem:[#allocation2 + $0xf8] sm:$0xff]
          %942 = vst.msk [vmem:[%s301] sm:$0xff] %vm874, %v910
          %943 = vst.msk [vmem:[%s301 + $0x8] sm:$0xff] %vm874, %v911
          %944 = vst.msk [vmem:[%s301 + $0x10] sm:$0xff] %vm874, %v912
          %945 = vst.msk [vmem:[%s301 + $0x18] sm:$0xff] %vm874, %v913
          %946 = vst.msk [vmem:[%s301 + $0x20] sm:$0xff] %vm874, %v914
          %947 = vst.msk [vmem:[%s301 + $0x28] sm:$0xff] %vm874, %v915
          %948 = vst.msk [vmem:[%s301 + $0x30] sm:$0xff] %vm874, %v916
          %949 = vst.msk [vmem:[%s301 + $0x38] sm:$0xff] %vm874, %v917
          %950 = vst.msk [vmem:[%s301 + $0x40] sm:$0xff] %vm874, %v918
          %951 = vst.msk [vmem:[%s301 + $0x48] sm:$0xff] %vm874, %v919
          %952 = vst.msk [vmem:[%s301 + $0x50] sm:$0xff] %vm874, %v920
          %953 = vst.msk [vmem:[%s301 + $0x58] sm:$0xff] %vm874, %v921
          %954 = vst.msk [vmem:[%s301 + $0x60] sm:$0xff] %vm874, %v922
          %955 = vst.msk [vmem:[%s301 + $0x68] sm:$0xff] %vm874, %v923
          %956 = vst.msk [vmem:[%s301 + $0x70] sm:$0xff] %vm874, %v924
          %957 = vst.msk [vmem:[%s301 + $0x78] sm:$0xff] %vm874, %v925
          %958 = vst.msk [vmem:[%s301 + $0x80] sm:$0xff] %vm874, %v926
          %959 = vst.msk [vmem:[%s301 + $0x88] sm:$0xff] %vm874, %v927
          %960 = vst.msk [vmem:[%s301 + $0x90] sm:$0xff] %vm874, %v928
          %961 = vst.msk [vmem:[%s301 + $0x98] sm:$0xff] %vm874, %v929
          %962 = vst.msk [vmem:[%s301 + $0xa0] sm:$0xff] %vm874, %v930
          %963 = vst.msk [vmem:[%s301 + $0xa8] sm:$0xff] %vm874, %v931
          %964 = vst.msk [vmem:[%s301 + $0xb0] sm:$0xff] %vm874, %v932
          %965 = vst.msk [vmem:[%s301 + $0xb8] sm:$0xff] %vm874, %v933
          %966 = vst.msk [vmem:[%s301 + $0xc0] sm:$0xff] %vm874, %v934
          %967 = vst.msk [vmem:[%s301 + $0xc8] sm:$0xff] %vm874, %v935
          %968 = vst.msk [vmem:[%s301 + $0xd0] sm:$0xff] %vm874, %v936
          %969 = vst.msk [vmem:[%s301 + $0xd8] sm:$0xff] %vm874, %v937
          %970 = vst.msk [vmem:[%s301 + $0xe0] sm:$0xff] %vm874, %v938
          %971 = vst.msk [vmem:[%s301 + $0xe8] sm:$0xff] %vm874, %v939
          %972 = vst.msk [vmem:[%s301 + $0xf0] sm:$0xff] %vm874, %v940
          %973 = vst.msk [vmem:[%s301 + $0xf8] sm:$0xff] %vm874, %v941
          %v974 = vsel %vm874, %v910, 0.0
          %v975 = vsel %vm874, %v911, 0.0
          %v976 = vadd.f32 %v974, %v975
          %v977 = vsel %vm874, %v912, 0.0
          %v978 = vadd.f32 %v976, %v977
          %v979 = vsel %vm874, %v913, 0.0
          %v980 = vadd.f32 %v978, %v979
          %v981 = vsel %vm874, %v914, 0.0
          %v982 = vadd.f32 %v980, %v981
          %v983 = vsel %vm874, %v915, 0.0
          %v984 = vadd.f32 %v982, %v983
          %v985 = vsel %vm874, %v916, 0.0
          %v986 = vadd.f32 %v984, %v985
          %v987 = vsel %vm874, %v917, 0.0
          %v988 = vadd.f32 %v986, %v987
          %v989 = vsel %vm874, %v918, 0.0
          %v990 = vadd.f32 %v988, %v989
          %v991 = vsel %vm874, %v919, 0.0
          %v992 = vadd.f32 %v990, %v991
          %v993 = vsel %vm874, %v920, 0.0
          %v994 = vadd.f32 %v992, %v993
          %v995 = vsel %vm874, %v921, 0.0
          %v996 = vadd.f32 %v994, %v995
          %v997 = vsel %vm874, %v922, 0.0
          %v998 = vadd.f32 %v996, %v997
          %v999 = vsel %vm874, %v923, 0.0
          %v1000 = vadd.f32 %v998, %v999
          %v1001 = vsel %vm874, %v924, 0.0
          %v1002 = vadd.f32 %v1000, %v1001
          %v1003 = vsel %vm874, %v925, 0.0
          %v1004 = vadd.f32 %v1002, %v1003
          %v1005 = vsel %vm874, %v926, 0.0
          %v1006 = vadd.f32 %v1004, %v1005
          %v1007 = vsel %vm874, %v927, 0.0
          %v1008 = vadd.f32 %v1006, %v1007
          %v1009 = vsel %vm874, %v928, 0.0
          %v1010 = vadd.f32 %v1008, %v1009
          %v1011 = vsel %vm874, %v929, 0.0
          %v1012 = vadd.f32 %v1010, %v1011
          %v1013 = vsel %vm874, %v930, 0.0
          %v1014 = vadd.f32 %v1012, %v1013
          %v1015 = vsel %vm874, %v931, 0.0
          %v1016 = vadd.f32 %v1014, %v1015
          %v1017 = vsel %vm874, %v932, 0.0
          %v1018 = vadd.f32 %v1016, %v1017
          %v1019 = vsel %vm874, %v933, 0.0
          %v1020 = vadd.f32 %v1018, %v1019
          %v1021 = vsel %vm874, %v934, 0.0
          %v1022 = vadd.f32 %v1020, %v1021
          %v1023 = vsel %vm874, %v935, 0.0
          %v1024 = vadd.f32 %v1022, %v1023
          %v1025 = vsel %vm874, %v936, 0.0
          %v1026 = vadd.f32 %v1024, %v1025
          %v1027 = vsel %vm874, %v937, 0.0
          %v1028 = vadd.f32 %v1026, %v1027
          %v1029 = vsel %vm874, %v938, 0.0
          %v1030 = vadd.f32 %v1028, %v1029
          %v1031 = vsel %vm874, %v939, 0.0
          %v1032 = vadd.f32 %v1030, %v1031
          %v1033 = vsel %vm874, %v940, 0.0
          %v1034 = vadd.f32 %v1032, %v1033
          %v1035 = vsel %vm874, %v941, 0.0
          %v1036 = vadd.f32 %v1034, %v1035
          %v1037 = vrot.slane %v1036, 4
          %v1038 = vadd.f32 %v1036, %v1037
          %v1039 = vrot.slane %v1038, 2
          %v1040 = vadd.f32 %v1038, %v1039
          %v1041 = vrot.slane %v1040, 1
          %v1042 = vadd.f32 %v1040, %v1041
          %v1043 = vmul.f32 %v910, %v910
          %v1044 = vmul.f32 %v911, %v911
          %v1045 = vmul.f32 %v912, %v912
          %v1046 = vmul.f32 %v913, %v913
          %v1047 = vmul.f32 %v914, %v914
          %v1048 = vmul.f32 %v915, %v915
          %v1049 = vmul.f32 %v916, %v916
          %v1050 = vmul.f32 %v917, %v917
          %v1051 = vmul.f32 %v918, %v918
          %v1052 = vmul.f32 %v919, %v919
          %v1053 = vmul.f32 %v920, %v920
          %v1054 = vmul.f32 %v921, %v921
          %v1055 = vmul.f32 %v922, %v922
          %v1056 = vmul.f32 %v923, %v923
          %v1057 = vmul.f32 %v924, %v924
          %v1058 = vmul.f32 %v925, %v925
          %v1059 = vmul.f32 %v926, %v926
          %v1060 = vmul.f32 %v927, %v927
          %v1061 = vmul.f32 %v928, %v928
          %v1062 = vmul.f32 %v929, %v929
          %v1063 = vmul.f32 %v930, %v930
          %v1064 = vmul.f32 %v931, %v931
          %v1065 = vmul.f32 %v932, %v932
          %v1066 = vmul.f32 %v933, %v933
          %v1067 = vmul.f32 %v934, %v934
          %v1068 = vmul.f32 %v935, %v935
          %v1069 = vmul.f32 %v936, %v936
          %v1070 = vmul.f32 %v937, %v937
          %v1071 = vmul.f32 %v938, %v938
          %v1072 = vmul.f32 %v939, %v939
          %v1073 = vmul.f32 %v940, %v940
          %v1074 = vmul.f32 %v941, %v941
          %v1075 = vsel %vm874, %v1043, 0.0
          %v1076 = vsel %vm874, %v1044, 0.0
          %v1077 = vadd.f32 %v1075, %v1076
          %v1078 = vsel %vm874, %v1045, 0.0
          %v1079 = vadd.f32 %v1077, %v1078
          %v1080 = vsel %vm874, %v1046, 0.0
          %v1081 = vadd.f32 %v1079, %v1080
          %v1082 = vsel %vm874, %v1047, 0.0
          %v1083 = vadd.f32 %v1081, %v1082
          %v1084 = vsel %vm874, %v1048, 0.0
          %v1085 = vadd.f32 %v1083, %v1084
          %v1086 = vsel %vm874, %v1049, 0.0
          %v1087 = vadd.f32 %v1085, %v1086
          %v1088 = vsel %vm874, %v1050, 0.0
          %v1089 = vadd.f32 %v1087, %v1088
          %v1090 = vsel %vm874, %v1051, 0.0
          %v1091 = vadd.f32 %v1089, %v1090
          %v1092 = vsel %vm874, %v1052, 0.0
          %v1093 = vadd.f32 %v1091, %v1092
          %v1094 = vsel %vm874, %v1053, 0.0
          %v1095 = vadd.f32 %v1093, %v1094
          %v1096 = vsel %vm874, %v1054, 0.0
          %v1097 = vadd.f32 %v1095, %v1096
          %v1098 = vsel %vm874, %v1055, 0.0
          %v1099 = vadd.f32 %v1097, %v1098
          %v1100 = vsel %vm874, %v1056, 0.0
          %v1101 = vadd.f32 %v1099, %v1100
          %v1102 = vsel %vm874, %v1057, 0.0
          %v1103 = vadd.f32 %v1101, %v1102
          %v1104 = vsel %vm874, %v1058, 0.0
          %v1105 = vadd.f32 %v1103, %v1104
          %v1106 = vsel %vm874, %v1059, 0.0
          %v1107 = vadd.f32 %v1105, %v1106
          %v1108 = vsel %vm874, %v1060, 0.0
          %v1109 = vadd.f32 %v1107, %v1108
          %v1110 = vsel %vm874, %v1061, 0.0
          %v1111 = vadd.f32 %v1109, %v1110
          %v1112 = vsel %vm874, %v1062, 0.0
          %v1113 = vadd.f32 %v1111, %v1112
          %v1114 = vsel %vm874, %v1063, 0.0
          %v1115 = vadd.f32 %v1113, %v1114
          %v1116 = vsel %vm874, %v1064, 0.0
          %v1117 = vadd.f32 %v1115, %v1116
          %v1118 = vsel %vm874, %v1065, 0.0
          %v1119 = vadd.f32 %v1117, %v1118
          %v1120 = vsel %vm874, %v1066, 0.0
          %v1121 = vadd.f32 %v1119, %v1120
          %v1122 = vsel %vm874, %v1067, 0.0
          %v1123 = vadd.f32 %v1121, %v1122
          %v1124 = vsel %vm874, %v1068, 0.0
          %v1125 = vadd.f32 %v1123, %v1124
          %v1126 = vsel %vm874, %v1069, 0.0
          %v1127 = vadd.f32 %v1125, %v1126
          %v1128 = vsel %vm874, %v1070, 0.0
          %v1129 = vadd.f32 %v1127, %v1128
          %v1130 = vsel %vm874, %v1071, 0.0
          %v1131 = vadd.f32 %v1129, %v1130
          %v1132 = vsel %vm874, %v1072, 0.0
          %v1133 = vadd.f32 %v1131, %v1132
          %v1134 = vsel %vm874, %v1073, 0.0
          %v1135 = vadd.f32 %v1133, %v1134
          %v1136 = vsel %vm874, %v1074, 0.0
          %v1137 = vadd.f32 %v1135, %v1136
          %v1138 = vrot.slane %v1137, 4
          %v1139 = vadd.f32 %v1137, %v1138
          %v1140 = vrot.slane %v1139, 2
          %v1141 = vadd.f32 %v1139, %v1140
          %v1142 = vrot.slane %v1141, 1
          %v1143 = vadd.f32 %v1141, %v1142
          %vm1144 = vcmask 516096
          %1145 = vst.msk [vmem:[%s266] sm:$0x1] %vm1144, %v1042
          %1146 = vst.msk [vmem:[%s272] sm:$0x1] %vm1144, %v1143
        $region36: #{tpu_custom_call.1} parent=27 // pred_fallthru
          _
        %s1147 = smul.u32 32, %s27
        %p1148 = scmp.lt.s32.totalorder %s1147, 255
        %s1149 = scalar_select %p1148, %s1147, 255
        %p1150 = scmp.lt.s32.totalorder %s28, 0
        %s1151 = scalar_select %p1150, %s28, 0
        %s1152 = sadd.s32 %s1151, %s1149
        %s1153 = smul.addr %s1152, 8
        %s1154 = scalar_lea.vmem %s2, %s1153
        %s1155 = sand.u32 %s135, 1
        %s1156 = scalar_lea.sflag [#allocation4], %s1155
        %s1157 = sand.u32 %s135, 1
        %s1158 = scalar_lea.vmem [#allocation3], %s1157
        %s1159 = sand.u32 %s163, 1
        %s1160 = scalar_lea.sflag [#allocation6], %s1159
        %s1161 = sand.u32 %s163, 1
        %s1162 = scalar_lea.vmem [#allocation5], %s1161
        // Predicated region
        $region37: #{tpu_custom_call.1} parent=27 // pred_check
          %p1163 = pneg %p117
        $region38: #{tpu_custom_call.1} parent=27 // pred_check_branch
          %1165 = sbr.rel (%p1163) target = $region40
        $region39: #{tpu_custom_call.1} parent=27 // pred_region
          %s1166 = smul.u32 32, %s27
        $region40: #{tpu_custom_call.1} parent=27 // pred_fallthru
          _
        // Predicated region
        $region41: #{tpu_custom_call.1} parent=27 // pred_check
          %p1167 = pneg %p145
        $region42: #{tpu_custom_call.1} parent=27 // pred_check_branch
          %1169 = sbr.rel (%p1167) target = $region44
        $region43: #{tpu_custom_call.1} parent=27 // pred_region
          %s1171 = ssub.s32 16, 16
          %1172 = vsyncadd %s1156, %s1171
          %s1173 = sadd.s32 %s28, %s27
          %s1174 = smul.addr %s1173, 16
          %s1175 = scalar_lea.hbm %s3, %s1174
          %s1177 = sshll.u32 %s1158, 4
          %s1178 = int_to_ptr.vmem [resolvable:$true] %s1177
          %1180 = dma.vmem_to_hbm [thread:$0]  %s1178, 16, %s1175, %s1156
        $region44: #{tpu_custom_call.1} parent=27 // pred_fallthru
          _
        // Predicated region
        $region45: #{tpu_custom_call.1} parent=27 // pred_check
          %p1181 = pneg %p173
        $region46: #{tpu_custom_call.1} parent=27 // pred_check_branch
          %1183 = sbr.rel (%p1181) target = $region48
        $region47: #{tpu_custom_call.1} parent=27 // pred_region
          %s1185 = ssub.s32 16, 16
          %1186 = vsyncadd %s1160, %s1185
          %s1187 = sadd.s32 %s28, %s27
          %s1188 = smul.addr %s1187, 16
          %s1189 = scalar_lea.hbm %s4, %s1188
          %s1191 = sshll.u32 %s1162, 4
          %s1192 = int_to_ptr.vmem [resolvable:$true] %s1191
          %1194 = dma.vmem_to_hbm [thread:$0]  %s1192, 16, %s1189, %s1160
        $region48: #{tpu_custom_call.1} parent=27 // pred_fallthru
          _
      $region28: #{tpu_custom_call.1} parent=5 // pred_fallthru
        _
      %p1195 = scmp.le.s32.totalorder 2, %s17
      // Predicated region
      $region49: #{tpu_custom_call.1} parent=5 // pred_check
        %p1196 = pneg %p1195
      $region50: #{tpu_custom_call.1} parent=5 // pred_check_branch
        %1198 = sbr.rel (%p1196) target = $region52
      $region51: #{tpu_custom_call.1} parent=5 // pred_region
        %s1199 = ssub.s32 %s17, 2
        // Predicated region
        $region53: #{tpu_custom_call.1} parent=51 // pred_check
          %p1200 = pneg %p123
        $region54: #{tpu_custom_call.1} parent=51 // pred_check_branch
          %1202 = sbr.rel (%p1200) target = $region56
        $region55: #{tpu_custom_call.1} parent=51 // pred_region
          %s1203 = smul.u32 32, %s30
          %p1204 = scmp.lt.s32.totalorder %s1203, 255
          %s1205 = scalar_select %p1204, %s1203, 255
          %p1206 = scmp.lt.s32.totalorder %s31, 0
          %s1207 = scalar_select %p1206, %s31, 0
          %s1208 = sadd.s32 %s1207, %s1205
          %s1209 = smul.addr %s1208, 8
          %s1210 = scalar_lea.vmem %s2, %s1209
        $region56: #{tpu_custom_call.1} parent=51 // pred_fallthru
          _
        // Predicated region
        $region57: #{tpu_custom_call.1} parent=51 // pred_check
          %p1211 = pneg %p151
        $region58: #{tpu_custom_call.1} parent=51 // pred_check_branch
          %1213 = sbr.rel (%p1211) target = $region60
        $region59: #{tpu_custom_call.1} parent=51 // pred_region
          %s1214 = sand.u32 %s136, 1
          %s1215 = scalar_lea.sflag [#allocation4], %s1214
          %s1216 = sand.u32 %s136, 1
          %s1217 = scalar_lea.vmem [#allocation3], %s1216
          %1218 = dma.done %s1215, 16
        $region60: #{tpu_custom_call.1} parent=51 // pred_fallthru
          _
        // Predicated region
        $region61: #{tpu_custom_call.1} parent=51 // pred_check
          %p1219 = pneg %p179
        $region62: #{tpu_custom_call.1} parent=51 // pred_check_branch
          %1221 = sbr.rel (%p1219) target = $region64
        $region63: #{tpu_custom_call.1} parent=51 // pred_region
          %s1222 = sand.u32 %s164, 1
          %s1223 = scalar_lea.sflag [#allocation6], %s1222
          %s1224 = sand.u32 %s164, 1
          %s1225 = scalar_lea.vmem [#allocation5], %s1224
          %1226 = dma.done %s1223, 16
        $region64: #{tpu_custom_call.1} parent=51 // pred_fallthru
          _
      $region52: #{tpu_custom_call.1} parent=5 // pred_fallthru
        _
    $region6: #{tpu_custom_call.1} parent=1 // loop_footer
      %s21 = sadd.s32 1, %s17
    $region7: #{tpu_custom_call.1} parent=1 // loop_footer_branch
      %16 = sbr.rel target = $region3
    $region8: #{tpu_custom_call.1} parent=1 // loop_exit
      _
    %1227 = vsyncpa [#allocation4], 1
    %s1228 = scalar_lea.sflag [#allocation4], 1
    %1229 = vsyncpa %s1228, 1
    %1230 = vsyncpa [#allocation6], 1
    %s1231 = scalar_lea.sflag [#allocation6], 1
    %1232 = vsyncpa %s1231, 1

</llo_original>
